<compile_context>
chip_gen: v6e
topology: v6e:2x2x1
jax: 0.10.0
libtpu: 0.0.40
codegen_flags: <defaults>
</compile_context>

<pallas_src>
import math

import jax
import jax.numpy as jnp
from jax import lax
from jax.experimental import pallas as pl
from jax.experimental.pallas import tpu as pltpu


def _make_lr_kernel(n_chunks, chunk_rows):
    """Kernel closure over static chunking parameters."""

    def lr_kernel(x_ref, w_ref, b_ref, o_ref):
        # x_ref: (TR, 384) VMEM  -- 64 samples x 6 features per lane-dense row
        # w_ref: (384, 64) VMEM  -- block-diagonal expanded weights (resident)
        # b_ref: (1,)      SMEM  -- bias scalar
        # o_ref: (TR, 64)  VMEM  -- one sigmoid output per sample
        bias = b_ref[0]

        def block(xc):
            # One MXU dot does 64 dot-products per row AND compacts them into
            # dense lanes; accumulate in f32.
            acc = jnp.dot(xc, w_ref[...], preferred_element_type=jnp.float32)
            acc = acc + bias
            # sigmoid(z) = 0.5 * (tanh(0.5 z) + 1): EUP push + 2 VALU ops.
            return (0.5 * (jnp.tanh(0.5 * acc) + 1.0)).astype(o_ref.dtype)

        if n_chunks == 1:
            o_ref[...] = block(x_ref[...])
        else:
            # Chunked inner loop bounds vreg live ranges (~20 vregs/chunk).
            def body(c, carry):
                r0 = pl.multiple_of(c * chunk_rows, chunk_rows)
                xc = x_ref[pl.ds(r0, chunk_rows), :]
                o_ref[pl.ds(r0, chunk_rows), :] = block(xc)
                return carry

            lax.fori_loop(0, n_chunks, body, 0)

    return lr_kernel


def lr_forward(x, w, b, *, block_rows=1024, chunk_rows=128):
    """Logistic-regression forward:  sigmoid(x @ w + b).

    x: (B, D) float, w: (D,), b: (1,)  ->  (B, 1)
    """
    B, D = x.shape
    G = 128 // math.gcd(128, D)     # samples packed per lane-row (64 for D=6)
    L = G * D                       # lanes per row (384), multiple of 128
    ALIGN = 8 * G                   # 512: keeps every MXU tile M-aligned

    # Minimal alignment pad only (no pad-to-tile).  Zero-copy when aligned.
    Bp = pl.cdiv(B, ALIGN) * ALIGN
    xp = x if Bp == B else jnp.pad(x, ((0, Bp - B), (0, 0)))
    R = Bp // G
    # Layout-preserving reshape (bitcast, no HBM pass): (Bp, 6) -> (Bp/64, 384)
    xg = xp.reshape(R, L)

    # Block-diagonal expanded weights: Wg[l, s] = w[l % D] iff l // D == s.
    # (Could be precomputed once per weight update; it is tiny: 96 KiB.)
    lane = jnp.arange(L)
    Wg = jnp.where((lane[:, None] // D) == jnp.arange(G)[None, :],
                   w[lane % D][:, None], 0).astype(x.dtype)

    # Tile-size selection: big steps (default 65536 samples) to amortize the
    # ~0.35us/step overhead, capped so the grid keeps >= ~4 steps for v7x's
    # two TensorCores when the batch allows it.
    block_rows = max(chunk_rows, (block_rows // chunk_rows) * chunk_rows)
    if R <= chunk_rows:
        TR = R                      # single block (equals full dim -> legal)
        n_chunks = 1
    else:
        TR = min(block_rows,
                 pl.cdiv(pl.cdiv(R, 4), chunk_rows) * chunk_rows)
        n_chunks = TR // chunk_rows
    grid = (pl.cdiv(R, TR),)

    out = pl.pallas_call(
        _make_lr_kernel(n_chunks, chunk_rows),
        out_shape=jax.ShapeDtypeStruct((R, G), x.dtype),
        grid=grid,
        in_specs=[
            # Lane-dense activation tile, tiled along the sample axis.
            pl.BlockSpec((TR, L), lambda i: (i, 0)),
            # Expanded weights: constant block, stays resident in VMEM.
            pl.BlockSpec((L, G), lambda i: (0, 0)),
            # Bias scalar in SMEM.
            pl.BlockSpec(memory_space=pltpu.MemorySpace.SMEM),
        ],
        out_specs=pl.BlockSpec((TR, G), lambda i: (i, 0)),
        compiler_params=pltpu.CompilerParams(
            dimension_semantics=("parallel",),   # megacore split on v7x
        ),
    )(xg, Wg, b)

    # (R, 64) row-major is exactly sample order -> free reshape, then drop pad.
    return out.reshape(Bp, 1)[:B]


if __name__ == "__main__":
    in_channel = 6
    batch = 1000   # small (24 KB); exercises the alignment-pad + tail-slice path

    key = jax.random.PRNGKey(0)
    kx, kw, kb = jax.random.split(key, 3)

    # Deterministic init mimicking nn.Linear default: U(-1/sqrt(fan_in), ...)
    bound = 1.0 / (in_channel ** 0.5)
    w = jax.random.uniform(kw, (in_channel,), jnp.float32, -bound, bound)
    b = jax.random.uniform(kb, (1,), jnp.float32, -bound, bound)
    x = jax.random.normal(kx, (batch, in_channel), jnp.float32)

    out = jax.block_until_ready(lr_forward(x, w, b))

    # Exact-f32 VPU reference (no matmul).  Tolerance covers the case where the
    # MXU f32 path runs as a reduced-precision bf16 multi-pass on some
    # generations; logits are O(1), so 2e-3 post-sigmoid comfortably bounds
    # that while still catching real bugs.
    ref = jax.nn.sigmoid(jnp.sum(x * w[None, :], axis=1, keepdims=True) + b[0])
    assert out.shape == (batch, 1)
    assert jnp.allclose(out, ref, atol=2e-3, rtol=2e-3), float(
        jnp.max(jnp.abs(out - ref)))

    print("KERNEL_OK")
</pallas_src>

<mosaic_0001>
module attributes {stable_mosaic.version = 11 : i64} {
  func.func @lr_kernel(%arg0: i32, %arg1: memref<16x384xf32, #tpu.memory_space<vmem>>, %arg2: memref<384x64xf32, #tpu.memory_space<vmem>>, %arg3: memref<1xf32, #tpu.memory_space<smem>>, %arg4: memref<16x64xf32, #tpu.memory_space<vmem>>) attributes {dimension_semantics = [#tpu.dimension_semantics<parallel>], iteration_bounds = array<i64: 1>, scalar_prefetch = 0 : i64, scratch_operands = 0 : i64, tpu.core_type = #tpu.core_type<tc>, window_params = [{transform_indices = @transform_0, window_bounds = array<i64: 16, 384>}, {pipeline_mode = #tpu.pipeline_mode<synchronous>, transform_indices = @transform_1, window_bounds = array<i64: 384, 64>}, {transform_indices = @transform_2, window_bounds = array<i64: 1>}, {transform_indices = @transform_3, window_bounds = array<i64: 16, 64>}]} {
    %c0 = arith.constant 0 : index
    %0 = memref.load %arg3[%c0] : memref<1xf32, #tpu.memory_space<smem>>
    %c0_0 = arith.constant 0 : index
    %c0_1 = arith.constant 0 : index
    %1 = vector.load %arg1[%c0_0, %c0_1] : memref<16x384xf32, #tpu.memory_space<vmem>>, vector<16x384xf32>
    %c0_2 = arith.constant 0 : index
    %c0_3 = arith.constant 0 : index
    %2 = vector.load %arg2[%c0_2, %c0_3] : memref<384x64xf32, #tpu.memory_space<vmem>>, vector<384x64xf32>
    %cst = arith.constant dense<0.000000e+00> : vector<16x64xf32>
    %3 = tpu.matmul %1, %2, %cst {dimension_numbers = #tpu.dot_dimension_numbers<[1], [0], [0], [1], [0, 0, 1, 1], [], []>} : vector<16x384xf32>, vector<384x64xf32>, vector<16x64xf32> -> vector<16x64xf32>
    %4 = vector.broadcast %0 : f32 to vector<16x64xf32>
    %5 = arith.addf %3, %4 : vector<16x64xf32>
    %cst_4 = arith.constant 5.000000e-01 : f32
    %6 = vector.broadcast %cst_4 : f32 to vector<16x64xf32>
    %7 = arith.mulf %6, %5 : vector<16x64xf32>
    %8 = math.tanh %7 : vector<16x64xf32>
    %cst_5 = arith.constant 1.000000e+00 : f32
    %9 = vector.broadcast %cst_5 : f32 to vector<16x64xf32>
    %10 = arith.addf %8, %9 : vector<16x64xf32>
    %cst_6 = arith.constant 5.000000e-01 : f32
    %11 = vector.broadcast %cst_6 : f32 to vector<16x64xf32>
    %12 = arith.mulf %11, %10 : vector<16x64xf32>
    %c0_7 = arith.constant 0 : index
    %c0_8 = arith.constant 0 : index
    %13 = vector.load %arg4[%c0_7, %c0_8] : memref<16x64xf32, #tpu.memory_space<vmem>>, vector<16x64xf32>
    tpu.vector_store %arg4[%c0_7, %c0_8], %12 {strides = array<i32>} : memref<16x64xf32, #tpu.memory_space<vmem>>, vector<16x64xf32>,
    return
  }
  func.func @transform_0(%arg0: i32) -> (i32, i32) {
    %c0_i32 = arith.constant 0 : i32
    %c0_i32_0 = arith.constant 0 : i32
    return %arg0, %c0_i32 : i32, i32
  }
  func.func @transform_1(%arg0: i32) -> (i32, i32) {
    %c0_i32 = arith.constant 0 : i32
    %c0_i32_0 = arith.constant 0 : i32
    %c0_i32_1 = arith.constant 0 : i32
    return %c0_i32, %c0_i32_0 : i32, i32
  }
  func.func @transform_2(%arg0: i32) -> i32 {
    %c0_i32 = arith.constant 0 : i32
    %c0_i32_0 = arith.constant 0 : i32
    return %c0_i32 : i32
  }
  func.func @transform_3(%arg0: i32) -> (i32, i32) {
    %c0_i32 = arith.constant 0 : i32
    %c0_i32_0 = arith.constant 0 : i32
    return %arg0, %c0_i32 : i32, i32
  }
}

</mosaic_0001>

<llo_original>
// kernel: tpu_custom_call.1
$region0: #{tpu_custom_call.1}
  #allocation0 [shape = 'u32[]', space=smem, size = 0x4, offset = 0x4, fixed_abs, tag = 'smem constant byte address 0x4 - core index']
  #allocation1 [shape = 'u32[144,128]{1,0:T(1,128)}', space=vmem, size = 0x12000, scoped, tag = 'internal scratch']
  #allocation2 [shape = 'f32[1]{0:T(128)S(6)}', space=smem, size = 0x200, scoped, tag = 'scoped memory for tpu_custom_call.1']
  %s0 = inlined_call_operand.vmem [shape: f32[16,384], index: 0, kind: input, shape index: {}]
  %s1 = inlined_call_operand.vmem [shape: f32[384,64], index: 1, kind: input, shape index: {}]
  %s2 = inlined_call_operand.<no memory space> [shape: f32[1], index: 2, kind: input, shape index: {}]
  %s3 = inlined_call_operand.hbm [shape: f32[16,64], index: 3, kind: output, shape index: {}]
  %s4 = sld [smem:[#allocation0]]
  $region22: #{tpu_custom_call.1} parent=0
    _
  %s6 = ssub.s32 1, %s4
  %s7 = scalar_select 0, %s6, %s4
  %8 = sst [smem:[#allocation2]] %s2
  $region1: #{tpu_custom_call.1} parent=0
    #allocation3 [shape = 'u8[8192]{0}', space=vmem, size = 0x2000, scoped, tag = 'output window, operand 0, single buffered']
    #allocation4 [shape = 's32[1]{0}', space=sflag, size = 0x4, scoped, tag = 'scoped memory for tpu_custom_call.1']
    %9 = vsyncpa [#allocation4], 0
    // Predicated region
    $region2: #{tpu_custom_call.1} parent=1 // pred_check
      _
    $region3: #{tpu_custom_call.1} parent=1 // pred_check_branch
      %11 = sbr.rel (0) target = $region5
    $region4: #{tpu_custom_call.1} parent=1 // pred_region
      _
    $region5: #{tpu_custom_call.1} parent=1 // pred_fallthru
      _
    // Predicated region
    $region6: #{tpu_custom_call.1} parent=1 // pred_check
      _
    $region7: #{tpu_custom_call.1} parent=1 // pred_check_branch
      %13 = sbr.rel (0) target = $region9
    $region8: #{tpu_custom_call.1} parent=1 // pred_region
      _
    $region9: #{tpu_custom_call.1} parent=1 // pred_fallthru
      _
    // Predicated region
    $region10: #{tpu_custom_call.1} parent=1 // pred_check
      _
    $region11: #{tpu_custom_call.1} parent=1 // pred_check_branch
      %15 = sbr.rel (0) target = $region13
    $region12: #{tpu_custom_call.1} parent=1 // pred_region
      _
    $region13: #{tpu_custom_call.1} parent=1 // pred_fallthru
      _
    %s16 = sld [smem:[#allocation2]]
    %v17 = vld [vmem:[%s0] sm:$0xff]
    %v18 = vld [vmem:[%s0 + $0x8] sm:$0xff]
    %v19 = vld [vmem:[%s0 + $0x10] sm:$0xff]
    %v20 = vld [vmem:[%s0 + $0x18] sm:$0xff]
    %v21 = vld [vmem:[%s0 + $0x20] sm:$0xff]
    %v22 = vld [vmem:[%s0 + $0x28] sm:$0xff]
    %v23 = vld [vmem:[%s1] sm:$0xff]
    %v24 = vld [vmem:[%s1 + $0x8] sm:$0xff]
    %v25 = vld [vmem:[%s1 + $0x10] sm:$0xff]
    %v26 = vld [vmem:[%s1 + $0x18] sm:$0xff]
    %v27 = vld [vmem:[%s1 + $0x20] sm:$0xff]
    %v28 = vld [vmem:[%s1 + $0x28] sm:$0xff]
    %v29 = vld [vmem:[%s1 + $0x30] sm:$0xff]
    %v30 = vld [vmem:[%s1 + $0x38] sm:$0xff]
    %v31 = vld [vmem:[%s1 + $0x40] sm:$0xff]
    %v32 = vld [vmem:[%s1 + $0x48] sm:$0xff]
    %v33 = vld [vmem:[%s1 + $0x50] sm:$0xff]
    %v34 = vld [vmem:[%s1 + $0x58] sm:$0xff]
    %v35 = vld [vmem:[%s1 + $0x60] sm:$0xff]
    %v36 = vld [vmem:[%s1 + $0x68] sm:$0xff]
    %v37 = vld [vmem:[%s1 + $0x70] sm:$0xff]
    %v38 = vld [vmem:[%s1 + $0x78] sm:$0xff]
    %v39 = vld [vmem:[%s1 + $0x80] sm:$0xff]
    %v40 = vld [vmem:[%s1 + $0x88] sm:$0xff]
    %v41 = vld [vmem:[%s1 + $0x90] sm:$0xff]
    %v42 = vld [vmem:[%s1 + $0x98] sm:$0xff]
    %v43 = vld [vmem:[%s1 + $0xa0] sm:$0xff]
    %v44 = vld [vmem:[%s1 + $0xa8] sm:$0xff]
    %v45 = vld [vmem:[%s1 + $0xb0] sm:$0xff]
    %v46 = vld [vmem:[%s1 + $0xb8] sm:$0xff]
    %v47 = vld [vmem:[%s1 + $0xc0] sm:$0xff]
    %v48 = vld [vmem:[%s1 + $0xc8] sm:$0xff]
    %v49 = vld [vmem:[%s1 + $0xd0] sm:$0xff]
    %v50 = vld [vmem:[%s1 + $0xd8] sm:$0xff]
    %v51 = vld [vmem:[%s1 + $0xe0] sm:$0xff]
    %v52 = vld [vmem:[%s1 + $0xe8] sm:$0xff]
    %v53 = vld [vmem:[%s1 + $0xf0] sm:$0xff]
    %v54 = vld [vmem:[%s1 + $0xf8] sm:$0xff]
    %v55 = vld [vmem:[%s1 + $0x100] sm:$0xff]
    %v56 = vld [vmem:[%s1 + $0x108] sm:$0xff]
    %v57 = vld [vmem:[%s1 + $0x110] sm:$0xff]
    %v58 = vld [vmem:[%s1 + $0x118] sm:$0xff]
    %v59 = vld [vmem:[%s1 + $0x120] sm:$0xff]
    %v60 = vld [vmem:[%s1 + $0x128] sm:$0xff]
    %v61 = vld [vmem:[%s1 + $0x130] sm:$0xff]
    %v62 = vld [vmem:[%s1 + $0x138] sm:$0xff]
    %v63 = vld [vmem:[%s1 + $0x140] sm:$0xff]
    %v64 = vld [vmem:[%s1 + $0x148] sm:$0xff]
    %v65 = vld [vmem:[%s1 + $0x150] sm:$0xff]
    %v66 = vld [vmem:[%s1 + $0x158] sm:$0xff]
    %v67 = vld [vmem:[%s1 + $0x160] sm:$0xff]
    %v68 = vld [vmem:[%s1 + $0x168] sm:$0xff]
    %v69 = vld [vmem:[%s1 + $0x170] sm:$0xff]
    %v70 = vld [vmem:[%s1 + $0x178] sm:$0xff]
    %v71 = vstv %s16
    %72 = vmatprep.subr.mxu0 0.0
    %73 = vmatpush1.msra.mxu0 %v38
    %74 = vmatprep.subr.mxu0 0.0
    %75 = vmatpush1.msra.mxu0 %v37
    %76 = vmatprep.subr.mxu0 0.0
    %77 = vmatpush1.msra.mxu0 %v36
    %78 = vmatprep.subr.mxu0 0.0
    %79 = vmatpush1.msra.mxu0 %v35
    %80 = vmatprep.subr.mxu0 0.0
    %81 = vmatpush1.msra.mxu0 %v34
    %82 = vmatprep.subr.mxu0 0.0
    %83 = vmatpush1.msra.mxu0 %v33
    %84 = vmatprep.subr.mxu0 0.0
    %85 = vmatpush1.msra.mxu0 %v32
    %86 = vmatprep.subr.mxu0 0.0
    %87 = vmatpush1.msra.mxu0 %v31
    %88 = vmatprep.subr.mxu0 0.0
    %89 = vmatpush1.msra.mxu0 %v30
    %90 = vmatprep.subr.mxu0 0.0
    %91 = vmatpush1.msra.mxu0 %v29
    %92 = vmatprep.subr.mxu0 0.0
    %93 = vmatpush1.msra.mxu0 %v28
    %94 = vmatprep.subr.mxu0 0.0
    %95 = vmatpush1.msra.mxu0 %v27
    %96 = vmatprep.subr.mxu0 0.0
    %97 = vmatpush1.msra.mxu0 %v26
    %98 = vmatprep.subr.mxu0 0.0
    %99 = vmatpush1.msra.mxu0 %v25
    %100 = vmatprep.subr.mxu0 0.0
    %101 = vmatpush1.msra.mxu0 %v24
    %102 = vmatprep.subr.mxu0 0.0
    %103 = vmatpush1.msra.mxu0 %v23
    %104 = vmatprep.subr.mxu0 0.0
    %105 = vmatpush2.msra.mxu0 %v54
    %106 = vmatprep.subr.mxu0 0.0
    %107 = vmatpush2.msra.mxu0 %v53
    %108 = vmatprep.subr.mxu0 0.0
    %109 = vmatpush2.msra.mxu0 %v52
    %110 = vmatprep.subr.mxu0 0.0
    %111 = vmatpush2.msra.mxu0 %v51
    %112 = vmatprep.subr.mxu0 0.0
    %113 = vmatpush2.msra.mxu0 %v50
    %114 = vmatprep.subr.mxu0 0.0
    %115 = vmatpush2.msra.mxu0 %v49
    %116 = vmatprep.subr.mxu0 0.0
    %117 = vmatpush2.msra.mxu0 %v48
    %118 = vmatprep.subr.mxu0 0.0
    %119 = vmatpush2.msra.mxu0 %v47
    %120 = vmatprep.subr.mxu0 0.0
    %121 = vmatpush2.msra.mxu0 %v46
    %122 = vmatprep.subr.mxu0 0.0
    %123 = vmatpush2.msra.mxu0 %v45
    %124 = vmatprep.subr.mxu0 0.0
    %125 = vmatpush2.msra.mxu0 %v44
    %126 = vmatprep.subr.mxu0 0.0
    %127 = vmatpush2.msra.mxu0 %v43
    %128 = vmatprep.subr.mxu0 0.0
    %129 = vmatpush2.msra.mxu0 %v42
    %130 = vmatprep.subr.mxu0 0.0
    %131 = vmatpush2.msra.mxu0 %v41
    %132 = vmatprep.subr.mxu0 0.0
    %133 = vmatpush2.msra.mxu0 %v40
    %134 = vmatprep.subr.mxu0 0.0
    %135 = vmatpush2.msra.mxu0 %v39
    %136 = vmatprep.mubr.f32.mxu0 %v18
    %137 = vmatmul.mubr.f32.gmra.mxu0 %v17
    %v138 = vpop.f32.mrf.mxu0
    %v139 = vadd.f32 %v71, %v138
    %v140 = vpop.f32.mrf.mxu0
    %141 = vmatprep.mubr.f32.mxu0 %v21
    %142 = vmatmul.mubr.f32.gmra.mxu0 %v20
    %v143 = vpop.f32.mrf.mxu0
    %v144 = vadd.f32 %v71, %v143
    %v145 = vpop.f32.mrf.mxu0
    %146 = vdwg.mxu0
    %147 = vmatprep.subr.mxu0 0.0
    %148 = vmatpush1.msra.mxu0 %v70
    %149 = vmatprep.subr.mxu0 0.0
    %150 = vmatpush1.msra.mxu0 %v69
    %151 = vmatprep.subr.mxu0 0.0
    %152 = vmatpush1.msra.mxu0 %v68
    %153 = vmatprep.subr.mxu0 0.0
    %154 = vmatpush1.msra.mxu0 %v67
    %155 = vmatprep.subr.mxu0 0.0
    %156 = vmatpush1.msra.mxu0 %v66
    %157 = vmatprep.subr.mxu0 0.0
    %158 = vmatpush1.msra.mxu0 %v65
    %159 = vmatprep.subr.mxu0 0.0
    %160 = vmatpush1.msra.mxu0 %v64
    %161 = vmatprep.subr.mxu0 0.0
    %162 = vmatpush1.msra.mxu0 %v63
    %163 = vmatprep.subr.mxu0 0.0
    %164 = vmatpush1.msra.mxu0 %v62
    %165 = vmatprep.subr.mxu0 0.0
    %166 = vmatpush1.msra.mxu0 %v61
    %167 = vmatprep.subr.mxu0 0.0
    %168 = vmatpush1.msra.mxu0 %v60
    %169 = vmatprep.subr.mxu0 0.0
    %170 = vmatpush1.msra.mxu0 %v59
    %171 = vmatprep.subr.mxu0 0.0
    %172 = vmatpush1.msra.mxu0 %v58
    %173 = vmatprep.subr.mxu0 0.0
    %174 = vmatpush1.msra.mxu0 %v57
    %175 = vmatprep.subr.mxu0 0.0
    %176 = vmatpush1.msra.mxu0 %v56
    %177 = vmatprep.subr.mxu0 0.0
    %178 = vmatpush1.msra.mxu0 %v55
    %179 = vmatprep.subr.mxu0 0.0
    %180 = vmatpush2.msra.mxu0 0.0
    %181 = vmatprep.subr.mxu0 0.0
    %182 = vmatpush2.msra.mxu0 0.0
    %183 = vmatprep.subr.mxu0 0.0
    %184 = vmatpush2.msra.mxu0 0.0
    %185 = vmatprep.subr.mxu0 0.0
    %186 = vmatpush2.msra.mxu0 0.0
    %187 = vmatprep.subr.mxu0 0.0
    %188 = vmatpush2.msra.mxu0 0.0
    %189 = vmatprep.subr.mxu0 0.0
    %190 = vmatpush2.msra.mxu0 0.0
    %191 = vmatprep.subr.mxu0 0.0
    %192 = vmatpush2.msra.mxu0 0.0
    %193 = vmatprep.subr.mxu0 0.0
    %194 = vmatpush2.msra.mxu0 0.0
    %195 = vmatprep.subr.mxu0 0.0
    %196 = vmatpush2.msra.mxu0 0.0
    %197 = vmatprep.subr.mxu0 0.0
    %198 = vmatpush2.msra.mxu0 0.0
    %199 = vmatprep.subr.mxu0 0.0
    %200 = vmatpush2.msra.mxu0 0.0
    %201 = vmatprep.subr.mxu0 0.0
    %202 = vmatpush2.msra.mxu0 0.0
    %203 = vmatprep.subr.mxu0 0.0
    %204 = vmatpush2.msra.mxu0 0.0
    %205 = vmatprep.subr.mxu0 0.0
    %206 = vmatpush2.msra.mxu0 0.0
    %207 = vmatprep.subr.mxu0 0.0
    %208 = vmatpush2.msra.mxu0 0.0
    %209 = vmatprep.subr.mxu0 0.0
    %210 = vmatpush2.msra.mxu0 0.0
    %211 = vmatprep.mubr.f32.mxu0 0.0
    %212 = vmatmul.mubr.f32.gmra.mxu0 %v19
    %v213 = vpop.f32.mrf.mxu0
    %v214 = vadd.f32 %v139, %v213
    %v215 = vpop.f32.mrf.mxu0
    %216 = vmatprep.mubr.f32.mxu0 0.0
    %217 = vmatmul.mubr.f32.gmra.mxu0 %v22
    %v218 = vpop.f32.mrf.mxu0
    %v219 = vadd.f32 %v144, %v218
    %v220 = vpop.f32.mrf.mxu0
    %221 = vdwg.mxu0
    %v222 = vmul.f32 %v214, 0.5
    %v223 = vmul.f32 %v219, 0.5
    %v224 = vtanh.pop %v222
    %v225 = vtanh.pop %v223
    %v226 = vadd.f32 %v224, 1.0
    %v227 = vadd.f32 %v225, 1.0
    %v228 = vmul.f32 %v226, 0.5
    %v229 = vmul.f32 %v227, 0.5
    %vm230 = vcmask 523264
    %231 = vst.msk [vmem:[#allocation3] sm:$0xff] %vm230, %v228
    %232 = vst.msk [vmem:[#allocation3 + $0x8] sm:$0xff] %vm230, %v229
    // Predicated region
    $region14: #{tpu_custom_call.1} parent=1 // pred_check
      _
    $region15: #{tpu_custom_call.1} parent=1 // pred_check_branch
      %234 = sbr.rel (0) target = $region17
    $region16: #{tpu_custom_call.1} parent=1 // pred_region
      %s236 = ssub.s32 256, 256
      %237 = vsyncadd [#allocation4], %s236
      %s238 = sshll.u32 [#allocation3], 4
      %s239 = int_to_ptr.vmem [resolvable:$true] %s238
      %244 = dma.vmem_to_hbm [thread:$0]  %s239, 256, %s3, [#allocation4], 128, 128, 8
    $region17: #{tpu_custom_call.1} parent=1 // pred_fallthru
      _
    // Predicated region
    $region18: #{tpu_custom_call.1} parent=1 // pred_check
      _
    $region19: #{tpu_custom_call.1} parent=1 // pred_check_branch
      %246 = sbr.rel (0) target = $region21
    $region20: #{tpu_custom_call.1} parent=1 // pred_region
      %247 = dma.done [#allocation4], 256
    $region21: #{tpu_custom_call.1} parent=1 // pred_fallthru
      _
    %248 = vsyncpa [#allocation4], 1

</llo_original>
